<compile_context>
chip_gen: v5e
topology: v5e:2x2
jax: 0.10.0
libtpu: 0.0.40
codegen_flags: <defaults>
</compile_context>

<pallas_src>
import jax
import jax.numpy as jnp
from jax import lax
from jax.experimental import pallas as pl
from jax.experimental.pallas import tpu as pltpu

_LANE = 128
_RSUB = 8  # rows per inner step -> exactly one (8,128) f32 vreg per class slab


def _round_up(a, b):
    return ((a + b - 1) // b) * b


def _cdiv(a, b):
    return -(-a // b)


def _vmem_capacity_bytes():
    try:
        info = pltpu.get_tpu_info()
        cap = getattr(info, "vmem_capacity_bytes", None)
        if cap:
            return int(min(max(cap, 32 << 20), 128 << 20))
    except Exception:
        pass
    return 64 << 20  # conservative: v7x per-TC physical VMEM


def _make_dice_kernel(C, rows_per_tile, S, needs_mask, unroll):
    n_sub = rows_per_tile // _RSUB
    chunk = _RSUB * _LANE

    def kernel(x_ref, t_ref, out_ref):
        # x_ref:   (1, C, rows_per_tile, 128) logits
        # t_ref:   (1, 1, rows_per_tile, 128) class ids (int8/int32)
        # out_ref: (1, 3, C, 8, 128) f32 sublane/lane-resolved partial sums, used as the
        #          VMEM-resident accumulator across the spatial grid axis.
        #          slot 0: intersection, 1: prob sum, 2: one-hot sum.
        j = pl.program_id(1)

        @pl.when(j == 0)
        def _():
            out_ref[...] = jnp.zeros_like(out_ref)

        if needs_mask:
            # hoisted out of the inner loop; only the combine with the loop index is per-chunk
            row = lax.broadcasted_iota(jnp.int32, (_RSUB, _LANE), 0)
            lane = lax.broadcasted_iota(jnp.int32, (_RSUB, _LANE), 1)
            rl = row * _LANE + lane
            base = j * (rows_per_tile * _LANE)

        # register-carried accumulators for this grid step (loaded/stored once per step)
        carry0 = (
            tuple(out_ref[0, 0, c, :, :] for c in range(C)),
            tuple(out_ref[0, 1, c, :, :] for c in range(C)),
            tuple(out_ref[0, 2, c, :, :] for c in range(C)),
        )

        def body(k, carry):
            ci, co, ct = carry
            r0 = pl.multiple_of(k * _RSUB, _RSUB)
            sl = pl.ds(r0, _RSUB)

            # per-class (8,128) slabs; class reduction unrolled on the VPU (no XLU)
            xs = [x_ref[0, c, sl, :].astype(jnp.float32) for c in range(C)]
            m = xs[0]
            for c in range(1, C):
                m = jnp.maximum(m, xs[c])
            es = [jnp.exp(xc - m) for xc in xs]
            denom = es[0]
            for c in range(1, C):
                denom = denom + es[c]
            inv = pl.reciprocal(denom, approx=True)   # EUP slot
            inv = inv * (2.0 - denom * inv)           # one Newton step -> ~f32 accuracy

            if needs_mask:
                pos = base + k * chunk + rl
                inv = jnp.where(pos < S, inv, 0.0)    # mask the shared factor once

            t = t_ref[0, 0, sl, :].astype(jnp.int32)

            ci_n, co_n, ct_n = [], [], []
            for c in range(C):
                p_c = es[c] * inv
                eq_f = (t == c).astype(jnp.float32)   # fused one-hot; padded labels (==C) never match
                ci_n.append(ci[c] + p_c * eq_f)
                co_n.append(co[c] + p_c)
                ct_n.append(ct[c] + eq_f)
            return (tuple(ci_n), tuple(co_n), tuple(ct_n))

        ci, co, ct = lax.fori_loop(0, n_sub, body, carry0, unroll=unroll)

        for c in range(C):
            out_ref[0, 0, c, :, :] = ci[c]
            out_ref[0, 1, c, :, :] = co[c]
            out_ref[0, 2, c, :, :] = ct[c]

    return kernel


def dice_loss(outputs, targets, smooth=1e-6, tile_rows=None):
    """outputs: (B, C, D, H, W) float (f32 or bf16); targets: (B, D, H, W) int.

    Returns scalar f32 dice loss matching the PyTorch DiceLoss.forward.
    """
    B, C, D, H, W = outputs.shape
    S = D * H * W

    x = outputs.reshape(B, C, S)
    # int8 labels while C < 128 -> 1/4 the HBM traffic for the label stream.
    t_dtype = jnp.int8 if C < 128 else jnp.int32
    t = targets.reshape(B, 1, S).astype(t_dtype)

    x_bytes = jnp.dtype(x.dtype).itemsize
    t_bytes = jnp.dtype(t.dtype).itemsize

    # ---- generation-aware tile selection (sublane-dense (rows, 128) layout) ----
    phys = _vmem_capacity_bytes()
    budget = int(phys * 0.5)                           # for double-buffered input blocks
    per_row = 2 * _LANE * (C * x_bytes + t_bytes)      # x + t per 128-lane row, double-buffered
    rows_max = max(_RSUB, (budget // per_row) // _RSUB * _RSUB)

    rows_needed = _round_up(_cdiv(S, _LANE), _RSUB)
    rows_per_tile = min(rows_needed, rows_max)
    if tile_rows is not None:
        rows_per_tile = min(rows_per_tile, max(_RSUB, _round_up(int(tile_rows), _RSUB)))

    n_tiles = _cdiv(rows_needed, rows_per_tile)
    rows_total = n_tiles * rows_per_tile
    S_pad = rows_total * _LANE
    needs_mask = S_pad != S

    if needs_mask:
        x = jnp.pad(x, ((0, 0), (0, 0), (0, S_pad - S)))
        # pad labels with an out-of-range class so one-hot contributions vanish
        t = jnp.pad(t, ((0, 0), (0, 0), (0, S_pad - S)), constant_values=C)
    x = x.reshape(B, C, rows_total, _LANE)
    t = t.reshape(B, 1, rows_total, _LANE)

    n_sub = rows_per_tile // _RSUB
    unroll = 1
    for u in (8, 4, 2):
        if n_sub % u == 0:
            unroll = u
            break

    kernel = _make_dice_kernel(C, rows_per_tile, S, needs_mask, unroll)

    x_block = C * rows_per_tile * _LANE * x_bytes
    t_block = rows_per_tile * _LANE * t_bytes
    out_block = 3 * C * _RSUB * _LANE * 4
    vmem_limit = int(min(phys, max(2 * (x_block + t_block) + out_block + (8 << 20), 32 << 20)))

    partial = pl.pallas_call(
        kernel,
        out_shape=jax.ShapeDtypeStruct((B, 3, C, _RSUB, _LANE), jnp.float32),
        grid_spec=pltpu.PrefetchScalarGridSpec(
            num_scalar_prefetch=0,
            grid=(B, n_tiles),
            in_specs=[
                pl.BlockSpec((1, C, rows_per_tile, _LANE), lambda b, j: (b, 0, j, 0)),
                pl.BlockSpec((1, 1, rows_per_tile, _LANE), lambda b, j: (b, 0, j, 0)),
            ],
            out_specs=pl.BlockSpec((1, 3, C, _RSUB, _LANE), lambda b, j: (b, 0, 0, 0, 0)),
        ),
        compiler_params=pltpu.CompilerParams(
            dimension_semantics=("parallel", "arbitrary"),
            vmem_limit_bytes=vmem_limit,
        ),
    )(x, t)

    sums = partial.sum(axis=(-1, -2))     # (B, 3, C): the only host-side reductions
    inter = sums[:, 0]
    osum = sums[:, 1]
    tsum = sums[:, 2]
    dice = (2.0 * inter + smooth) / (osum + tsum + smooth)
    return (1.0 - dice.mean()).astype(jnp.float32)


def _dice_loss_ref(outputs, targets, smooth=1e-6):
    """Pure-JAX reference mirroring the PyTorch forward."""
    C = outputs.shape[1]
    p = jax.nn.softmax(outputs, axis=1)
    oh = jax.nn.one_hot(targets, C, dtype=jnp.float32)  # (B, D, H, W, C)
    oh = jnp.moveaxis(oh, -1, 1)                         # (B, C, D, H, W)
    inter = jnp.sum(p * oh, axis=(2, 3, 4))
    union = jnp.sum(p, axis=(2, 3, 4)) + jnp.sum(oh, axis=(2, 3, 4))
    dice = (2.0 * inter + smooth) / (union + smooth)
    return 1.0 - dice.mean()


if __name__ == "__main__":
    key = jax.random.PRNGKey(0)

    def check(B, C, D, H, W, tile_rows=None, tag=0, tol=1e-5):
        k1, k2 = jax.random.split(jax.random.fold_in(key, tag))
        logits = jax.random.normal(k1, (B, C, D, H, W), dtype=jnp.float32)
        labels = jax.random.randint(k2, (B, D, H, W), 0, C, dtype=jnp.int32)
        loss = jax.block_until_ready(dice_loss(logits, labels, tile_rows=tile_rows))
        ref = _dice_loss_ref(logits, labels)
        assert jnp.allclose(loss, ref, atol=tol, rtol=tol), (
            (B, C, D, H, W), float(loss), float(ref))

    # Small 3D segmentation shapes consistent with the module.
    check(2, 4, 4, 8, 8)                          # S=256: padded-tail mask, single tile
    check(2, 4, 8, 8, 32, tag=1)                  # S=2048: exact fit, single tile, unrolled fori
    check(2, 4, 8, 8, 32, tile_rows=8, tag=2)     # S=2048: multi-tile accumulation across grid
    check(2, 3, 3, 5, 7, tag=3)                   # S=105, C=3: mask + odd class count
    check(2, 4, 5, 9, 31, tile_rows=8, tag=4)     # S=1395: multi-tile + padded-tail mask
    check(1, 5, 4, 8, 8, tag=5)                   # B=1, C=5

    print("KERNEL_OK")
</pallas_src>

<mosaic_0001>
module attributes {stable_mosaic.version = 11 : i64} {
  func.func @kernel(%arg0: i32, %arg1: i32, %arg2: memref<1x4x8x128xf32, #tpu.memory_space<vmem>>, %arg3: memref<1x1x8x128xi8, #tpu.memory_space<vmem>>, %arg4: memref<1x3x4x8x128xf32, #tpu.memory_space<vmem>>) attributes {dimension_semantics = [#tpu.dimension_semantics<parallel>, #tpu.dimension_semantics<arbitrary>], iteration_bounds = array<i64: 2, 1>, scalar_prefetch = 0 : i64, scratch_operands = 0 : i64, tpu.core_type = #tpu.core_type<tc>, window_params = [{transform_indices = @transform_0, window_bounds = array<i64: 1, 4, 8, 128>}, {transform_indices = @transform_1, window_bounds = array<i64: 1, 1, 8, 128>}, {transform_indices = @transform_2, window_bounds = array<i64: 1, 3, 4, 8, 128>}]} {
    %c0_i32 = arith.constant 0 : i32
    %0 = arith.cmpi eq, %arg1, %c0_i32 : i32
    %1 = arith.extui %0 : i1 to i32
    %c0_i32_0 = arith.constant 0 : i32
    %2 = arith.cmpi ne, %1, %c0_i32_0 : i32
    scf.if %2 {
      %cst_137 = arith.constant 0.000000e+00 : f32
      %150 = vector.broadcast %cst_137 : f32 to vector<1x3x4x8x128xf32>
      %c0_138 = arith.constant 0 : index
      %c0_139 = arith.constant 0 : index
      %c0_140 = arith.constant 0 : index
      %c0_141 = arith.constant 0 : index
      %c0_142 = arith.constant 0 : index
      %151 = vector.load %arg4[%c0_138, %c0_139, %c0_140, %c0_141, %c0_142] : memref<1x3x4x8x128xf32, #tpu.memory_space<vmem>>, vector<1x3x4x8x128xf32>
      tpu.vector_store %arg4[%c0_138, %c0_139, %c0_140, %c0_141, %c0_142], %150 {strides = array<i32>} : memref<1x3x4x8x128xf32, #tpu.memory_space<vmem>>, vector<1x3x4x8x128xf32>,
    } else {
    }
    %3 = tpu.iota {dimensions = array<i32: 0>} : vector<8x128xi32>
    %4 = tpu.iota {dimensions = array<i32: 1>} : vector<8x128xi32>
    %c128_i32 = arith.constant 128 : i32
    %5 = vector.broadcast %c128_i32 : i32 to vector<8x128xi32>
    %6 = arith.muli %3, %5 : vector<8x128xi32>
    %7 = arith.addi %6, %4 : vector<8x128xi32>
    %c1024_i32 = arith.constant 1024 : i32
    %8 = arith.muli %arg1, %c1024_i32 : i32
    %c0 = arith.constant 0 : index
    %c0_1 = arith.constant 0 : index
    %c0_2 = arith.constant 0 : index
    %c0_3 = arith.constant 0 : index
    %c0_4 = arith.constant 0 : index
    %9 = vector.load %arg4[%c0, %c0_1, %c0_2, %c0_3, %c0_4] : memref<1x3x4x8x128xf32, #tpu.memory_space<vmem>>, vector<1x1x1x8x128xf32>
    %10 = vector.shape_cast %9 : vector<1x1x1x8x128xf32> to vector<8x128xf32>
    %c0_5 = arith.constant 0 : index
    %c0_6 = arith.constant 0 : index
    %c1 = arith.constant 1 : index
    %c0_7 = arith.constant 0 : index
    %c0_8 = arith.constant 0 : index
    %11 = vector.load %arg4[%c0_5, %c0_6, %c1, %c0_7, %c0_8] : memref<1x3x4x8x128xf32, #tpu.memory_space<vmem>>, vector<1x1x1x8x128xf32>
    %12 = vector.shape_cast %11 : vector<1x1x1x8x128xf32> to vector<8x128xf32>
    %c0_9 = arith.constant 0 : index
    %c0_10 = arith.constant 0 : index
    %c2 = arith.constant 2 : index
    %c0_11 = arith.constant 0 : index
    %c0_12 = arith.constant 0 : index
    %13 = vector.load %arg4[%c0_9, %c0_10, %c2, %c0_11, %c0_12] : memref<1x3x4x8x128xf32, #tpu.memory_space<vmem>>, vector<1x1x1x8x128xf32>
    %14 = vector.shape_cast %13 : vector<1x1x1x8x128xf32> to vector<8x128xf32>
    %c0_13 = arith.constant 0 : index
    %c0_14 = arith.constant 0 : index
    %c3 = arith.constant 3 : index
    %c0_15 = arith.constant 0 : index
    %c0_16 = arith.constant 0 : index
    %15 = vector.load %arg4[%c0_13, %c0_14, %c3, %c0_15, %c0_16] : memref<1x3x4x8x128xf32, #tpu.memory_space<vmem>>, vector<1x1x1x8x128xf32>
    %16 = vector.shape_cast %15 : vector<1x1x1x8x128xf32> to vector<8x128xf32>
    %c0_17 = arith.constant 0 : index
    %c1_18 = arith.constant 1 : index
    %c0_19 = arith.constant 0 : index
    %c0_20 = arith.constant 0 : index
    %c0_21 = arith.constant 0 : index
    %17 = vector.load %arg4[%c0_17, %c1_18, %c0_19, %c0_20, %c0_21] : memref<1x3x4x8x128xf32, #tpu.memory_space<vmem>>, vector<1x1x1x8x128xf32>
    %18 = vector.shape_cast %17 : vector<1x1x1x8x128xf32> to vector<8x128xf32>
    %c0_22 = arith.constant 0 : index
    %c1_23 = arith.constant 1 : index
    %c1_24 = arith.constant 1 : index
    %c0_25 = arith.constant 0 : index
    %c0_26 = arith.constant 0 : index
    %19 = vector.load %arg4[%c0_22, %c1_23, %c1_24, %c0_25, %c0_26] : memref<1x3x4x8x128xf32, #tpu.memory_space<vmem>>, vector<1x1x1x8x128xf32>
    %20 = vector.shape_cast %19 : vector<1x1x1x8x128xf32> to vector<8x128xf32>
    %c0_27 = arith.constant 0 : index
    %c1_28 = arith.constant 1 : index
    %c2_29 = arith.constant 2 : index
    %c0_30 = arith.constant 0 : index
    %c0_31 = arith.constant 0 : index
    %21 = vector.load %arg4[%c0_27, %c1_28, %c2_29, %c0_30, %c0_31] : memref<1x3x4x8x128xf32, #tpu.memory_space<vmem>>, vector<1x1x1x8x128xf32>
    %22 = vector.shape_cast %21 : vector<1x1x1x8x128xf32> to vector<8x128xf32>
    %c0_32 = arith.constant 0 : index
    %c1_33 = arith.constant 1 : index
    %c3_34 = arith.constant 3 : index
    %c0_35 = arith.constant 0 : index
    %c0_36 = arith.constant 0 : index
    %23 = vector.load %arg4[%c0_32, %c1_33, %c3_34, %c0_35, %c0_36] : memref<1x3x4x8x128xf32, #tpu.memory_space<vmem>>, vector<1x1x1x8x128xf32>
    %24 = vector.shape_cast %23 : vector<1x1x1x8x128xf32> to vector<8x128xf32>
    %c0_37 = arith.constant 0 : index
    %c2_38 = arith.constant 2 : index
    %c0_39 = arith.constant 0 : index
    %c0_40 = arith.constant 0 : index
    %c0_41 = arith.constant 0 : index
    %25 = vector.load %arg4[%c0_37, %c2_38, %c0_39, %c0_40, %c0_41] : memref<1x3x4x8x128xf32, #tpu.memory_space<vmem>>, vector<1x1x1x8x128xf32>
    %26 = vector.shape_cast %25 : vector<1x1x1x8x128xf32> to vector<8x128xf32>
    %c0_42 = arith.constant 0 : index
    %c2_43 = arith.constant 2 : index
    %c1_44 = arith.constant 1 : index
    %c0_45 = arith.constant 0 : index
    %c0_46 = arith.constant 0 : index
    %27 = vector.load %arg4[%c0_42, %c2_43, %c1_44, %c0_45, %c0_46] : memref<1x3x4x8x128xf32, #tpu.memory_space<vmem>>, vector<1x1x1x8x128xf32>
    %28 = vector.shape_cast %27 : vector<1x1x1x8x128xf32> to vector<8x128xf32>
    %c0_47 = arith.constant 0 : index
    %c2_48 = arith.constant 2 : index
    %c2_49 = arith.constant 2 : index
    %c0_50 = arith.constant 0 : index
    %c0_51 = arith.constant 0 : index
    %29 = vector.load %arg4[%c0_47, %c2_48, %c2_49, %c0_50, %c0_51] : memref<1x3x4x8x128xf32, #tpu.memory_space<vmem>>, vector<1x1x1x8x128xf32>
    %30 = vector.shape_cast %29 : vector<1x1x1x8x128xf32> to vector<8x128xf32>
    %c0_52 = arith.constant 0 : index
    %c2_53 = arith.constant 2 : index
    %c3_54 = arith.constant 3 : index
    %c0_55 = arith.constant 0 : index
    %c0_56 = arith.constant 0 : index
    %31 = vector.load %arg4[%c0_52, %c2_53, %c3_54, %c0_55, %c0_56] : memref<1x3x4x8x128xf32, #tpu.memory_space<vmem>>, vector<1x1x1x8x128xf32>
    %32 = vector.shape_cast %31 : vector<1x1x1x8x128xf32> to vector<8x128xf32>
    %c0_i32_57 = arith.constant 0 : i32
    %c8_i32 = arith.constant 8 : i32
    %33 = arith.muli %c0_i32_57, %c8_i32 : i32
    %34 = tpu.assume_multiple %33, 8 : i32
    %c0_58 = arith.constant 0 : index
    %c0_59 = arith.constant 0 : index
    %35 = arith.index_cast %34 : i32 to index
    %c0_60 = arith.constant 0 : index
    %36 = vector.load %arg2[%c0_58, %c0_59, %35, %c0_60] : memref<1x4x8x128xf32, #tpu.memory_space<vmem>>, vector<1x1x8x128xf32>
    %37 = vector.shape_cast %36 : vector<1x1x8x128xf32> to vector<8x128xf32>
    %c0_61 = arith.constant 0 : index
    %c1_62 = arith.constant 1 : index
    %38 = arith.index_cast %34 : i32 to index
    %c0_63 = arith.constant 0 : index
    %39 = vector.load %arg2[%c0_61, %c1_62, %38, %c0_63] : memref<1x4x8x128xf32, #tpu.memory_space<vmem>>, vector<1x1x8x128xf32>
    %40 = vector.shape_cast %39 : vector<1x1x8x128xf32> to vector<8x128xf32>
    %c0_64 = arith.constant 0 : index
    %c2_65 = arith.constant 2 : index
    %41 = arith.index_cast %34 : i32 to index
    %c0_66 = arith.constant 0 : index
    %42 = vector.load %arg2[%c0_64, %c2_65, %41, %c0_66] : memref<1x4x8x128xf32, #tpu.memory_space<vmem>>, vector<1x1x8x128xf32>
    %43 = vector.shape_cast %42 : vector<1x1x8x128xf32> to vector<8x128xf32>
    %c0_67 = arith.constant 0 : index
    %c3_68 = arith.constant 3 : index
    %44 = arith.index_cast %34 : i32 to index
    %c0_69 = arith.constant 0 : index
    %45 = vector.load %arg2[%c0_67, %c3_68, %44, %c0_69] : memref<1x4x8x128xf32, #tpu.memory_space<vmem>>, vector<1x1x8x128xf32>
    %46 = vector.shape_cast %45 : vector<1x1x8x128xf32> to vector<8x128xf32>
    %47 = arith.maximumf %37, %40 : vector<8x128xf32>
    %48 = arith.maximumf %47, %43 : vector<8x128xf32>
    %49 = arith.maximumf %48, %46 : vector<8x128xf32>
    %50 = arith.subf %37, %49 : vector<8x128xf32>
    %51 = math.exp %50 : vector<8x128xf32>
    %52 = arith.subf %40, %49 : vector<8x128xf32>
    %53 = math.exp %52 : vector<8x128xf32>
    %54 = arith.subf %43, %49 : vector<8x128xf32>
    %55 = math.exp %54 : vector<8x128xf32>
    %56 = arith.subf %46, %49 : vector<8x128xf32>
    %57 = math.exp %56 : vector<8x128xf32>
    %58 = arith.addf %51, %53 : vector<8x128xf32>
    %59 = arith.addf %58, %55 : vector<8x128xf32>
    %60 = arith.addf %59, %57 : vector<8x128xf32>
    %61 = tpu.reciprocal %60 {approx = true} : vector<8x128xf32> -> vector<8x128xf32>
    %62 = arith.mulf %60, %61 : vector<8x128xf32>
    %cst = arith.constant 2.000000e+00 : f32
    %63 = vector.broadcast %cst : f32 to vector<8x128xf32>
    %64 = arith.subf %63, %62 : vector<8x128xf32>
    %65 = arith.mulf %61, %64 : vector<8x128xf32>
    %c1024_i32_70 = arith.constant 1024 : i32
    %66 = arith.muli %c0_i32_57, %c1024_i32_70 : i32
    %67 = arith.addi %8, %66 : i32
    %68 = vector.broadcast %67 : i32 to vector<8x128xi32>
    %69 = arith.addi %68, %7 : vector<8x128xi32>
    %c256_i32 = arith.constant 256 : i32
    %70 = vector.broadcast %c256_i32 : i32 to vector<8x128xi32>
    %71 = arith.cmpi slt, %69, %70 : vector<8x128xi32>
    %cst_71 = arith.constant 0.000000e+00 : f32
    %72 = vector.broadcast %cst_71 : f32 to vector<8x128xf32>
    %73 = arith.select %71, %65, %72 : vector<8x128xi1>, vector<8x128xf32>
    %c0_72 = arith.constant 0 : index
    %c0_73 = arith.constant 0 : index
    %74 = arith.index_cast %34 : i32 to index
    %c0_74 = arith.constant 0 : index
    %75 = vector.load %arg3[%c0_72, %c0_73, %74, %c0_74] : memref<1x1x8x128xi8, #tpu.memory_space<vmem>>, vector<1x1x8x128xi8>
    %76 = vector.shape_cast %75 : vector<1x1x8x128xi8> to vector<8x128xi8>
    %77 = arith.extsi %76 : vector<8x128xi8> to vector<8x128xi32>
    %78 = arith.mulf %51, %73 : vector<8x128xf32>
    %c0_i32_75 = arith.constant 0 : i32
    %79 = vector.broadcast %c0_i32_75 : i32 to vector<8x128xi32>
    %80 = arith.cmpi eq, %77, %79 : vector<8x128xi32>
    %81 = arith.extui %80 : vector<8x128xi1> to vector<8x128xi32>
    %82 = arith.sitofp %81 : vector<8x128xi32> to vector<8x128xf32>
    %83 = arith.mulf %78, %82 : vector<8x128xf32>
    %84 = arith.addf %10, %83 : vector<8x128xf32>
    %85 = arith.addf %18, %78 : vector<8x128xf32>
    %86 = arith.addf %26, %82 : vector<8x128xf32>
    %87 = arith.mulf %53, %73 : vector<8x128xf32>
    %c1_i32 = arith.constant 1 : i32
    %88 = vector.broadcast %c1_i32 : i32 to vector<8x128xi32>
    %89 = arith.cmpi eq, %77, %88 : vector<8x128xi32>
    %90 = arith.extui %89 : vector<8x128xi1> to vector<8x128xi32>
    %91 = arith.sitofp %90 : vector<8x128xi32> to vector<8x128xf32>
    %92 = arith.mulf %87, %91 : vector<8x128xf32>
    %93 = arith.addf %12, %92 : vector<8x128xf32>
    %94 = arith.addf %20, %87 : vector<8x128xf32>
    %95 = arith.addf %28, %91 : vector<8x128xf32>
    %96 = arith.mulf %55, %73 : vector<8x128xf32>
    %c2_i32 = arith.constant 2 : i32
    %97 = vector.broadcast %c2_i32 : i32 to vector<8x128xi32>
    %98 = arith.cmpi eq, %77, %97 : vector<8x128xi32>
    %99 = arith.extui %98 : vector<8x128xi1> to vector<8x128xi32>
    %100 = arith.sitofp %99 : vector<8x128xi32> to vector<8x128xf32>
    %101 = arith.mulf %96, %100 : vector<8x128xf32>
    %102 = arith.addf %14, %101 : vector<8x128xf32>
    %103 = arith.addf %22, %96 : vector<8x128xf32>
    %104 = arith.addf %30, %100 : vector<8x128xf32>
    %105 = arith.mulf %57, %73 : vector<8x128xf32>
    %c3_i32 = arith.constant 3 : i32
    %106 = vector.broadcast %c3_i32 : i32 to vector<8x128xi32>
    %107 = arith.cmpi eq, %77, %106 : vector<8x128xi32>
    %108 = arith.extui %107 : vector<8x128xi1> to vector<8x128xi32>
    %109 = arith.sitofp %108 : vector<8x128xi32> to vector<8x128xf32>
    %110 = arith.mulf %105, %109 : vector<8x128xf32>
    %111 = arith.addf %16, %110 : vector<8x128xf32>
    %112 = arith.addf %24, %105 : vector<8x128xf32>
    %113 = arith.addf %32, %109 : vector<8x128xf32>
    %c1_i32_76 = arith.constant 1 : i32
    %c0_77 = arith.constant 0 : index
    %c0_78 = arith.constant 0 : index
    %c0_79 = arith.constant 0 : index
    %c0_80 = arith.constant 0 : index
    %c0_81 = arith.constant 0 : index
    %114 = vector.load %arg4[%c0_77, %c0_78, %c0_79, %c0_80, %c0_81] : memref<1x3x4x8x128xf32, #tpu.memory_space<vmem>>, vector<1x1x1x8x128xf32>
    %115 = vector.shape_cast %114 : vector<1x1x1x8x128xf32> to vector<8x128xf32>
    %116 = vector.shape_cast %84 : vector<8x128xf32> to vector<1x1x1x8x128xf32>
    tpu.vector_store %arg4[%c0_77, %c0_78, %c0_79, %c0_80, %c0_81], %116 {strides = array<i32>} : memref<1x3x4x8x128xf32, #tpu.memory_space<vmem>>, vector<1x1x1x8x128xf32>,
    %c0_82 = arith.constant 0 : index
    %c1_83 = arith.constant 1 : index
    %c0_84 = arith.constant 0 : index
    %c0_85 = arith.constant 0 : index
    %c0_86 = arith.constant 0 : index
    %117 = vector.load %arg4[%c0_82, %c1_83, %c0_84, %c0_85, %c0_86] : memref<1x3x4x8x128xf32, #tpu.memory_space<vmem>>, vector<1x1x1x8x128xf32>
    %118 = vector.shape_cast %117 : vector<1x1x1x8x128xf32> to vector<8x128xf32>
    %119 = vector.shape_cast %85 : vector<8x128xf32> to vector<1x1x1x8x128xf32>
    tpu.vector_store %arg4[%c0_82, %c1_83, %c0_84, %c0_85, %c0_86], %119 {strides = array<i32>} : memref<1x3x4x8x128xf32, #tpu.memory_space<vmem>>, vector<1x1x1x8x128xf32>,
    %c0_87 = arith.constant 0 : index
    %c2_88 = arith.constant 2 : index
    %c0_89 = arith.constant 0 : index
    %c0_90 = arith.constant 0 : index
    %c0_91 = arith.constant 0 : index
    %120 = vector.load %arg4[%c0_87, %c2_88, %c0_89, %c0_90, %c0_91] : memref<1x3x4x8x128xf32, #tpu.memory_space<vmem>>, vector<1x1x1x8x128xf32>
    %121 = vector.shape_cast %120 : vector<1x1x1x8x128xf32> to vector<8x128xf32>
    %122 = vector.shape_cast %86 : vector<8x128xf32> to vector<1x1x1x8x128xf32>
    tpu.vector_store %arg4[%c0_87, %c2_88, %c0_89, %c0_90, %c0_91], %122 {strides = array<i32>} : memref<1x3x4x8x128xf32, #tpu.memory_space<vmem>>, vector<1x1x1x8x128xf32>,
    %c0_92 = arith.constant 0 : index
    %c0_93 = arith.constant 0 : index
    %c1_94 = arith.constant 1 : index
    %c0_95 = arith.constant 0 : index
    %c0_96 = arith.constant 0 : index
    %123 = vector.load %arg4[%c0_92, %c0_93, %c1_94, %c0_95, %c0_96] : memref<1x3x4x8x128xf32, #tpu.memory_space<vmem>>, vector<1x1x1x8x128xf32>
    %124 = vector.shape_cast %123 : vector<1x1x1x8x128xf32> to vector<8x128xf32>
    %125 = vector.shape_cast %93 : vector<8x128xf32> to vector<1x1x1x8x128xf32>
    tpu.vector_store %arg4[%c0_92, %c0_93, %c1_94, %c0_95, %c0_96], %125 {strides = array<i32>} : memref<1x3x4x8x128xf32, #tpu.memory_space<vmem>>, vector<1x1x1x8x128xf32>,
    %c0_97 = arith.constant 0 : index
    %c1_98 = arith.constant 1 : index
    %c1_99 = arith.constant 1 : index
    %c0_100 = arith.constant 0 : index
    %c0_101 = arith.constant 0 : index
    %126 = vector.load %arg4[%c0_97, %c1_98, %c1_99, %c0_100, %c0_101] : memref<1x3x4x8x128xf32, #tpu.memory_space<vmem>>, vector<1x1x1x8x128xf32>
    %127 = vector.shape_cast %126 : vector<1x1x1x8x128xf32> to vector<8x128xf32>
    %128 = vector.shape_cast %94 : vector<8x128xf32> to vector<1x1x1x8x128xf32>
    tpu.vector_store %arg4[%c0_97, %c1_98, %c1_99, %c0_100, %c0_101], %128 {strides = array<i32>} : memref<1x3x4x8x128xf32, #tpu.memory_space<vmem>>, vector<1x1x1x8x128xf32>,
    %c0_102 = arith.constant 0 : index
    %c2_103 = arith.constant 2 : index
    %c1_104 = arith.constant 1 : index
    %c0_105 = arith.constant 0 : index
    %c0_106 = arith.constant 0 : index
    %129 = vector.load %arg4[%c0_102, %c2_103, %c1_104, %c0_105, %c0_106] : memref<1x3x4x8x128xf32, #tpu.memory_space<vmem>>, vector<1x1x1x8x128xf32>
    %130 = vector.shape_cast %129 : vector<1x1x1x8x128xf32> to vector<8x128xf32>
    %131 = vector.shape_cast %95 : vector<8x128xf32> to vector<1x1x1x8x128xf32>
    tpu.vector_store %arg4[%c0_102, %c2_103, %c1_104, %c0_105, %c0_106], %131 {strides = array<i32>} : memref<1x3x4x8x128xf32, #tpu.memory_space<vmem>>, vector<1x1x1x8x128xf32>,
    %c0_107 = arith.constant 0 : index
    %c0_108 = arith.constant 0 : index
    %c2_109 = arith.constant 2 : index
    %c0_110 = arith.constant 0 : index
    %c0_111 = arith.constant 0 : index
    %132 = vector.load %arg4[%c0_107, %c0_108, %c2_109, %c0_110, %c0_111] : memref<1x3x4x8x128xf32, #tpu.memory_space<vmem>>, vector<1x1x1x8x128xf32>
    %133 = vector.shape_cast %132 : vector<1x1x1x8x128xf32> to vector<8x128xf32>
    %134 = vector.shape_cast %102 : vector<8x128xf32> to vector<1x1x1x8x128xf32>
    tpu.vector_store %arg4[%c0_107, %c0_108, %c2_109, %c0_110, %c0_111], %134 {strides = array<i32>} : memref<1x3x4x8x128xf32, #tpu.memory_space<vmem>>, vector<1x1x1x8x128xf32>,
    %c0_112 = arith.constant 0 : index
    %c1_113 = arith.constant 1 : index
    %c2_114 = arith.constant 2 : index
    %c0_115 = arith.constant 0 : index
    %c0_116 = arith.constant 0 : index
    %135 = vector.load %arg4[%c0_112, %c1_113, %c2_114, %c0_115, %c0_116] : memref<1x3x4x8x128xf32, #tpu.memory_space<vmem>>, vector<1x1x1x8x128xf32>
    %136 = vector.shape_cast %135 : vector<1x1x1x8x128xf32> to vector<8x128xf32>
    %137 = vector.shape_cast %103 : vector<8x128xf32> to vector<1x1x1x8x128xf32>
    tpu.vector_store %arg4[%c0_112, %c1_113, %c2_114, %c0_115, %c0_116], %137 {strides = array<i32>} : memref<1x3x4x8x128xf32, #tpu.memory_space<vmem>>, vector<1x1x1x8x128xf32>,
    %c0_117 = arith.constant 0 : index
    %c2_118 = arith.constant 2 : index
    %c2_119 = arith.constant 2 : index
    %c0_120 = arith.constant 0 : index
    %c0_121 = arith.constant 0 : index
    %138 = vector.load %arg4[%c0_117, %c2_118, %c2_119, %c0_120, %c0_121] : memref<1x3x4x8x128xf32, #tpu.memory_space<vmem>>, vector<1x1x1x8x128xf32>
    %139 = vector.shape_cast %138 : vector<1x1x1x8x128xf32> to vector<8x128xf32>
    %140 = vector.shape_cast %104 : vector<8x128xf32> to vector<1x1x1x8x128xf32>
    tpu.vector_store %arg4[%c0_117, %c2_118, %c2_119, %c0_120, %c0_121], %140 {strides = array<i32>} : memref<1x3x4x8x128xf32, #tpu.memory_space<vmem>>, vector<1x1x1x8x128xf32>,
    %c0_122 = arith.constant 0 : index
    %c0_123 = arith.constant 0 : index
    %c3_124 = arith.constant 3 : index
    %c0_125 = arith.constant 0 : index
    %c0_126 = arith.constant 0 : index
    %141 = vector.load %arg4[%c0_122, %c0_123, %c3_124, %c0_125, %c0_126] : memref<1x3x4x8x128xf32, #tpu.memory_space<vmem>>, vector<1x1x1x8x128xf32>
    %142 = vector.shape_cast %141 : vector<1x1x1x8x128xf32> to vector<8x128xf32>
    %143 = vector.shape_cast %111 : vector<8x128xf32> to vector<1x1x1x8x128xf32>
    tpu.vector_store %arg4[%c0_122, %c0_123, %c3_124, %c0_125, %c0_126], %143 {strides = array<i32>} : memref<1x3x4x8x128xf32, #tpu.memory_space<vmem>>, vector<1x1x1x8x128xf32>,
    %c0_127 = arith.constant 0 : index
    %c1_128 = arith.constant 1 : index
    %c3_129 = arith.constant 3 : index
    %c0_130 = arith.constant 0 : index
    %c0_131 = arith.constant 0 : index
    %144 = vector.load %arg4[%c0_127, %c1_128, %c3_129, %c0_130, %c0_131] : memref<1x3x4x8x128xf32, #tpu.memory_space<vmem>>, vector<1x1x1x8x128xf32>
    %145 = vector.shape_cast %144 : vector<1x1x1x8x128xf32> to vector<8x128xf32>
    %146 = vector.shape_cast %112 : vector<8x128xf32> to vector<1x1x1x8x128xf32>
    tpu.vector_store %arg4[%c0_127, %c1_128, %c3_129, %c0_130, %c0_131], %146 {strides = array<i32>} : memref<1x3x4x8x128xf32, #tpu.memory_space<vmem>>, vector<1x1x1x8x128xf32>,
    %c0_132 = arith.constant 0 : index
    %c2_133 = arith.constant 2 : index
    %c3_134 = arith.constant 3 : index
    %c0_135 = arith.constant 0 : index
    %c0_136 = arith.constant 0 : index
    %147 = vector.load %arg4[%c0_132, %c2_133, %c3_134, %c0_135, %c0_136] : memref<1x3x4x8x128xf32, #tpu.memory_space<vmem>>, vector<1x1x1x8x128xf32>
    %148 = vector.shape_cast %147 : vector<1x1x1x8x128xf32> to vector<8x128xf32>
    %149 = vector.shape_cast %113 : vector<8x128xf32> to vector<1x1x1x8x128xf32>
    tpu.vector_store %arg4[%c0_132, %c2_133, %c3_134, %c0_135, %c0_136], %149 {strides = array<i32>} : memref<1x3x4x8x128xf32, #tpu.memory_space<vmem>>, vector<1x1x1x8x128xf32>,
    return
  }
  func.func @transform_0(%arg0: i32, %arg1: i32) -> (i32, i32, i32, i32) {
    %c0_i32 = arith.constant 0 : i32
    %c0_i32_0 = arith.constant 0 : i32
    %c0_i32_1 = arith.constant 0 : i32
    return %arg0, %c0_i32, %arg1, %c0_i32_0 : i32, i32, i32, i32
  }
  func.func @transform_1(%arg0: i32, %arg1: i32) -> (i32, i32, i32, i32) {
    %c0_i32 = arith.constant 0 : i32
    %c0_i32_0 = arith.constant 0 : i32
    %c0_i32_1 = arith.constant 0 : i32
    return %arg0, %c0_i32, %arg1, %c0_i32_0 : i32, i32, i32, i32
  }
  func.func @transform_2(%arg0: i32, %arg1: i32) -> (i32, i32, i32, i32, i32) {
    %c0_i32 = arith.constant 0 : i32
    %c0_i32_0 = arith.constant 0 : i32
    %c0_i32_1 = arith.constant 0 : i32
    %c0_i32_2 = arith.constant 0 : i32
    %c0_i32_3 = arith.constant 0 : i32
    return %arg0, %c0_i32, %c0_i32_0, %c0_i32_1, %c0_i32_2 : i32, i32, i32, i32, i32
  }
}

</mosaic_0001>

<llo_original>
// kernel: tpu_custom_call.1
$region0: #{tpu_custom_call.1}
  #allocation0 [shape = 'u32[]', space=smem, size = 0x4, offset = 0x4, fixed_abs, tag = 'smem constant byte address 0x4 - core index']
  #allocation1 [shape = 'u32[72,128]{1,0:T(1,128)}', space=vmem, size = 0x9000, scoped, tag = 'internal scratch']
  %s0 = inlined_call_operand.hbm [shape: f32[2,4,8,128], index: 0, kind: input, shape index: {}]
  %s1 = inlined_call_operand.hbm [shape: s8[2,1,8,128], index: 1, kind: input, shape index: {}]
  %s2 = inlined_call_operand.hbm [shape: f32[2,3,4,8,128], index: 2, kind: output, shape index: {}]
  %s3 = sld [smem:[#allocation0]]
  $region53: #{tpu_custom_call.1} parent=0
    _
  %s5 = ssub.s32 1, %s3
  %s6 = scalar_select 0, %s5, %s3
  $region1: #{tpu_custom_call.1} parent=0
    #allocation2 [shape = 'u8[32768]{0}', space=vmem, size = 0x8000, scoped, tag = 'input window, operand 0']
    #allocation3 [shape = 's32[2]{0}', space=sflag, size = 0x8, scoped, tag = 'scoped memory for tpu_custom_call.1']
    #allocation4 [shape = 's32[2]{0}', space=sflag, size = 0x8, scoped, tag = 'scoped memory for tpu_custom_call.1']
    #allocation5 [shape = 'u8[2048]{0}', space=vmem, size = 0x800, scoped, tag = 'input window, operand 1']
    #allocation6 [shape = 's32[2]{0}', space=sflag, size = 0x8, scoped, tag = 'scoped memory for tpu_custom_call.1']
    #allocation7 [shape = 'u8[98304]{0}', space=vmem, size = 0x18000, scoped, tag = 'output window, operand 0']
    %7 = vsyncpa [#allocation3], 0
    %s8 = scalar_lea.sflag [#allocation3], 1
    %9 = vsyncpa %s8, 0
    %10 = vsyncpa [#allocation6], 0
    %s11 = scalar_lea.sflag [#allocation6], 1
    %12 = vsyncpa %s11, 0
    %13 = vsyncpa [#allocation4], 0
    %s14 = scalar_lea.sflag [#allocation4], 1
    %15 = vsyncpa %s14, 0
    loop: start=0, step=1, limit=4
    $region2: #{tpu_custom_call.1} parent=1 // loop_pre_header
      _
    $region3: #{tpu_custom_call.1} parent=1 // loop_header
      %s17 = sphi 0, %s21
      %p18 = scmp.ge.s32.totalorder %s17, 4
      %s24 = sphi 0, %s36
      %s25 = sphi 0, %s32
      %s26 = sphi 0, %s24
      %s27 = sphi 0, %s25
      %s28 = sphi 0, %s26
      %s29 = sphi 0, %s27
      %s41 = sphi 0, %s43
      %s44 = sphi 0, %s41
      %s45 = sphi 0, %s44
      %s61 = sphi 0, %s45
      %s69 = sphi 0, %s71
      %s72 = sphi 0, %s69
      %s73 = sphi 0, %s72
      %s89 = sphi 0, %s73
      %s95 = sphi 0, %s97
      %s98 = sphi 0, %s95
      %s99 = sphi 0, %s98
      %s115 = sphi 0, %s99
    $region4: #{tpu_custom_call.1} parent=1 // loop_header_branch
      %20 = sbr.rel (%p18) target = $region8
    $region5: #{tpu_custom_call.1} parent=1 // loop_body
      %s22 = ssub.s32 %s17, 1
      %s23 = ssub.s32 %s17, 2
      %s30 = sadd.s32 1, %s25
      %p31 = scmp.ge.s32.totalorder %s30, 1
      %s32 = scalar_select %p31, 0, %s30
      %s33 = sadd.s32 1, %s24
      %s34 = scalar_select %p31, %s33, %s24
      %p35 = scmp.ge.s32.totalorder %s34, 2
      %s36 = scalar_select %p35, 0, %s34
      %s37 = ssub.s32 %s24, %s36
      %s38 = ssub.s32 %s25, %s32
      %s39 = sor.u32 %s37, %s38
      %p40 = scmp.eq.s32.totalorder %s39, 0
      %s42 = sadd.s32 %s41, 1
      %s43 = scalar_select %p40, %s41, %s42
      %p46 = pneg %p40
      %p47 = scmp.eq.s32.totalorder %s17, 1
      %p48 = por %p46, %p47
      %p49 = scmp.ne.s32.totalorder %s41, %s44
      %p50 = scmp.eq.s32.totalorder %s17, 0
      %p51 = por %p49, %p50
      %p52 = scmp.ne.s32.totalorder %s41, %s44
      %p53 = scmp.eq.s32.totalorder %s22, 1
      %p54 = por %p52, %p53
      %p55 = scmp.ne.s32.totalorder %s44, %s45
      %p56 = scmp.eq.s32.totalorder %s22, 0
      %p57 = por %p55, %p56
      %p58 = scmp.ne.s32.totalorder %s44, %s45
      %p59 = scmp.eq.s32.totalorder %s23, 1
      %p60 = por %p58, %p59
      %p62 = scmp.ne.s32.totalorder %s45, %s61
      %p63 = scmp.eq.s32.totalorder %s23, 0
      %p64 = por %p62, %p63
      %s65 = ssub.s32 %s24, %s36
      %s66 = ssub.s32 %s25, %s32
      %s67 = sor.u32 %s65, %s66
      %p68 = scmp.eq.s32.totalorder %s67, 0
      %s70 = sadd.s32 %s69, 1
      %s71 = scalar_select %p68, %s69, %s70
      %p74 = pneg %p68
      %p75 = scmp.eq.s32.totalorder %s17, 1
      %p76 = por %p74, %p75
      %p77 = scmp.ne.s32.totalorder %s69, %s72
      %p78 = scmp.eq.s32.totalorder %s17, 0
      %p79 = por %p77, %p78
      %p80 = scmp.ne.s32.totalorder %s69, %s72
      %p81 = scmp.eq.s32.totalorder %s22, 1
      %p82 = por %p80, %p81
      %p83 = scmp.ne.s32.totalorder %s72, %s73
      %p84 = scmp.eq.s32.totalorder %s22, 0
      %p85 = por %p83, %p84
      %p86 = scmp.ne.s32.totalorder %s72, %s73
      %p87 = scmp.eq.s32.totalorder %s23, 1
      %p88 = por %p86, %p87
      %p90 = scmp.ne.s32.totalorder %s73, %s89
      %p91 = scmp.eq.s32.totalorder %s23, 0
      %p92 = por %p90, %p91
      %s93 = ssub.s32 %s24, %s36
      %p94 = scmp.eq.s32.totalorder %s93, 0
      %s96 = sadd.s32 %s95, 1
      %s97 = scalar_select %p94, %s95, %s96
      %p100 = pneg %p94
      %p101 = scmp.eq.s32.totalorder %s17, 1
      %p102 = por %p100, %p101
      %p103 = scmp.ne.s32.totalorder %s95, %s98
      %p104 = scmp.eq.s32.totalorder %s17, 0
      %p105 = por %p103, %p104
      %p106 = scmp.ne.s32.totalorder %s95, %s98
      %p107 = scmp.eq.s32.totalorder %s22, 1
      %p108 = por %p106, %p107
      %p109 = scmp.ne.s32.totalorder %s98, %s99
      %p110 = scmp.eq.s32.totalorder %s22, 0
      %p111 = por %p109, %p110
      %p112 = scmp.ne.s32.totalorder %s98, %s99
      %p113 = scmp.eq.s32.totalorder %s23, 1
      %p114 = por %p112, %p113
      %p116 = scmp.ne.s32.totalorder %s99, %s115
      %p117 = scmp.eq.s32.totalorder %s23, 0
      %p118 = por %p116, %p117
      %p119 = scmp.le.s32.totalorder 1, %s17
      %p120 = scmp.lt.s32.totalorder %s17, 3
      %p121 = pnand %p119, %p120
      %p122 = pneg %p121
      // Predicated region
      $region9: #{tpu_custom_call.1} parent=5 // pred_check
        _
      $region10: #{tpu_custom_call.1} parent=5 // pred_check_branch
        %124 = sbr.rel (%p121) target = $region12
      $region11: #{tpu_custom_call.1} parent=5 // pred_region
        %s125 = ssub.s32 %s17, 1
      $region12: #{tpu_custom_call.1} parent=5 // pred_fallthru
        _
      %p126 = scmp.lt.s32.totalorder %s17, 2
      // Predicated region
      $region13: #{tpu_custom_call.1} parent=5 // pred_check
        %p127 = pneg %p126
      $region14: #{tpu_custom_call.1} parent=5 // pred_check_branch
        %129 = sbr.rel (%p127) target = $region16
      $region15: #{tpu_custom_call.1} parent=5 // pred_region
        // Predicated region
        $region17: #{tpu_custom_call.1} parent=15 // pred_check
          %p130 = pneg %p51
        $region18: #{tpu_custom_call.1} parent=15 // pred_check_branch
          %132 = sbr.rel (%p130) target = $region20
        $region19: #{tpu_custom_call.1} parent=15 // pred_region
          %s133 = sand.u32 %s41, 1
          %s134 = scalar_lea.sflag [#allocation3], %s133
          %s135 = sand.u32 %s41, 1
          %s136 = smul.addr %s135, 32
          %s137 = scalar_lea.vmem [#allocation2], %s136
          %139 = vsyncadd %s134, 0
          %s140 = smul.addr %s24, 4
          %s141 = sadd.s32 %s25, %s140
          %s142 = smul.addr %s141, 8
          %s143 = scalar_lea.hbm %s0, %s142
          %s144 = sshll.u32 %s143, 4
          %s145 = int_to_ptr.hbm [resolvable:$true] %s144
          %s146 = sshll.u32 %s137, 4
          %s147 = int_to_ptr.vmem [resolvable:$true] %s146
          %152 = dma.hbm_to_vmem [thread:$0]  %s145, 512, %s147, %s134, 128, 128, 8
        $region20: #{tpu_custom_call.1} parent=15 // pred_fallthru
          _
        // Predicated region
        $region21: #{tpu_custom_call.1} parent=15 // pred_check
          %p153 = pneg %p79
        $region22: #{tpu_custom_call.1} parent=15 // pred_check_branch
          %155 = sbr.rel (%p153) target = $region24
        $region23: #{tpu_custom_call.1} parent=15 // pred_region
          %s156 = sand.u32 %s69, 1
          %s157 = scalar_lea.sflag [#allocation6], %s156
          %s158 = sand.u32 %s69, 1
          %s159 = smul.addr %s158, 2
          %s160 = scalar_lea.vmem [#allocation5], %s159
          %162 = vsyncadd %s157, 0
          %s163 = sadd.s32 %s25, %s24
          %s164 = smul.addr %s163, 2
          %s165 = scalar_lea.hbm %s1, %s164
          %s167 = sshll.u32 %s165, 4
          %s168 = int_to_ptr.hbm [resolvable:$true] %s167
          %s169 = sshll.u32 %s160, 4
          %s170 = int_to_ptr.vmem [resolvable:$true] %s169
          %172 = dma.hbm_to_vmem [thread:$0]  %s168, 32, %s170, %s157
        $region24: #{tpu_custom_call.1} parent=15 // pred_fallthru
          _
      $region16: #{tpu_custom_call.1} parent=5 // pred_fallthru
        _
      %p173 = scmp.le.s32.totalorder 1, %s17
      %p174 = scmp.lt.s32.totalorder %s17, 3
      %p175 = pnand %p173, %p174
      %p176 = pneg %p175
      // Predicated region
      $region25: #{tpu_custom_call.1} parent=5 // pred_check
        _
      $region26: #{tpu_custom_call.1} parent=5 // pred_check_branch
        %178 = sbr.rel (%p175) target = $region28
      $region27: #{tpu_custom_call.1} parent=5 // pred_region
        %s179 = ssub.s32 %s17, 1
        %s180 = sand.u32 %s44, 1
        %s181 = scalar_lea.sflag [#allocation3], %s180
        %s182 = sand.u32 %s44, 1
        %s183 = smul.addr %s182, 32
        %s184 = scalar_lea.vmem [#allocation2], %s183
        // Predicated region
        $region29: #{tpu_custom_call.1} parent=27 // pred_check
          %p185 = pneg %p57
        $region30: #{tpu_custom_call.1} parent=27 // pred_check_branch
          %187 = sbr.rel (%p185) target = $region32
        $region31: #{tpu_custom_call.1} parent=27 // pred_region
          %189 = dma.done %s181, 512
        $region32: #{tpu_custom_call.1} parent=27 // pred_fallthru
          _
        %s190 = sand.u32 %s72, 1
        %s191 = scalar_lea.sflag [#allocation6], %s190
        %s192 = sand.u32 %s72, 1
        %s193 = smul.addr %s192, 2
        %s194 = scalar_lea.vmem [#allocation5], %s193
        // Predicated region
        $region33: #{tpu_custom_call.1} parent=27 // pred_check
          %p195 = pneg %p85
        $region34: #{tpu_custom_call.1} parent=27 // pred_check_branch
          %197 = sbr.rel (%p195) target = $region36
        $region35: #{tpu_custom_call.1} parent=27 // pred_region
          %199 = dma.done %s191, 32
        $region36: #{tpu_custom_call.1} parent=27 // pred_fallthru
          _
        %s200 = sand.u32 %s44, 1
        %s201 = scalar_lea.sflag [#allocation3], %s200
        %s202 = sand.u32 %s44, 1
        %s203 = smul.addr %s202, 32
        %s204 = scalar_lea.vmem [#allocation2], %s203
        %p205 = pneg %p57
        %p206 = pneg %p54
        %s207 = sand.u32 %s72, 1
        %s208 = scalar_lea.sflag [#allocation6], %s207
        %s209 = sand.u32 %s72, 1
        %s210 = smul.addr %s209, 2
        %s211 = scalar_lea.vmem [#allocation5], %s210
        %p212 = pneg %p85
        %p213 = pneg %p82
        %p214 = pneg %p111
        %p215 = pneg %p108
        %s216 = sand.u32 %s98, 1
        %s217 = scalar_lea.sflag [#allocation4], %s216
        %s218 = sand.u32 %s98, 1
        %s219 = smul.addr %s218, 96
        %s220 = scalar_lea.vmem [#allocation7], %s219
        %p221 = scmp.eq.s32.totalorder %s27, 0
        // Predicated region
        $region37: #{tpu_custom_call.1} parent=27 // pred_check
          %p222 = pneg %p221
        $region38: #{tpu_custom_call.1} parent=27 // pred_check_branch
          %224 = sbr.rel (%p222) target = $region40
        $region39: #{tpu_custom_call.1} parent=27 // pred_region
          %225 = vst [vmem:[%s220] sm:$0xff] 0.0
          %226 = vst [vmem:[%s220 + $0x8] sm:$0xff] 0.0
          %227 = vst [vmem:[%s220 + $0x10] sm:$0xff] 0.0
          %228 = vst [vmem:[%s220 + $0x18] sm:$0xff] 0.0
          %229 = vst [vmem:[%s220 + $0x20] sm:$0xff] 0.0
          %230 = vst [vmem:[%s220 + $0x28] sm:$0xff] 0.0
          %231 = vst [vmem:[%s220 + $0x30] sm:$0xff] 0.0
          %232 = vst [vmem:[%s220 + $0x38] sm:$0xff] 0.0
          %233 = vst [vmem:[%s220 + $0x40] sm:$0xff] 0.0
          %234 = vst [vmem:[%s220 + $0x48] sm:$0xff] 0.0
          %235 = vst [vmem:[%s220 + $0x50] sm:$0xff] 0.0
          %236 = vst [vmem:[%s220 + $0x58] sm:$0xff] 0.0
        $region40: #{tpu_custom_call.1} parent=27 // pred_fallthru
          _
        %v237 = vlaneseq
        %v238 = vshrl.u32 %v237, 7
        %v239 = vlaneseq
        %v240 = vand.u32 %v239, 127
        %v241 = vmul.u32 %v238, 128
        %v242 = vadd.s32 %v241, %v240
        %s243 = smul.u32 %s27, 1024
        %v244 = vld [vmem:[%s220] sm:$0xff]
        %s245 = scalar_lea.vmem %s220, 8 [#allocation7]
        %v246 = vld [vmem:[%s245] sm:$0xff]
        %s247 = scalar_lea.vmem %s220, 16 [#allocation7]
        %v248 = vld [vmem:[%s247] sm:$0xff]
        %s249 = scalar_lea.vmem %s220, 24 [#allocation7]
        %v250 = vld [vmem:[%s249] sm:$0xff]
        %s251 = scalar_lea.vmem %s220, 32 [#allocation7]
        %v252 = vld [vmem:[%s251] sm:$0xff]
        %s253 = scalar_lea.vmem %s220, 40 [#allocation7]
        %v254 = vld [vmem:[%s253] sm:$0xff]
        %s255 = scalar_lea.vmem %s220, 48 [#allocation7]
        %v256 = vld [vmem:[%s255] sm:$0xff]
        %s257 = scalar_lea.vmem %s220, 56 [#allocation7]
        %v258 = vld [vmem:[%s257] sm:$0xff]
        %s259 = scalar_lea.vmem %s220, 64 [#allocation7]
        %v260 = vld [vmem:[%s259] sm:$0xff]
        %s261 = scalar_lea.vmem %s220, 72 [#allocation7]
        %v262 = vld [vmem:[%s261] sm:$0xff]
        %s263 = scalar_lea.vmem %s220, 80 [#allocation7]
        %v264 = vld [vmem:[%s263] sm:$0xff]
        %s265 = scalar_lea.vmem %s220, 88 [#allocation7]
        %v266 = vld [vmem:[%s265] sm:$0xff]
        %v267 = vld [vmem:[%s184] sm:$0xff]
        %s268 = sadd.s32 0, 8
        %s269 = scalar_lea.vmem %s184, %s268 [#allocation2]
        %v270 = vld [vmem:[%s269] sm:$0xff]
        %s271 = sadd.s32 0, 16
        %s272 = scalar_lea.vmem %s184, %s271 [#allocation2]
        %v273 = vld [vmem:[%s272] sm:$0xff]
        %s274 = sadd.s32 0, 24
        %s275 = scalar_lea.vmem %s184, %s274 [#allocation2]
        %v276 = vld [vmem:[%s275] sm:$0xff]
        %v277 = vmax.f32 %v267, %v270
        %v278 = vmax.f32 %v277, %v273
        %v279 = vmax.f32 %v278, %v276
        %v280 = vsub.f32 %v267, %v279
        %v281 = vmul.f32 %v280, 1.442695
        %v282 = vpow.pop %v281
        %v283 = vsub.f32 %v270, %v279
        %v284 = vmul.f32 %v283, 1.442695
        %v285 = vpow.pop %v284
        %v286 = vsub.f32 %v273, %v279
        %v287 = vmul.f32 %v286, 1.442695
        %v288 = vpow.pop %v287
        %v289 = vsub.f32 %v276, %v279
        %v290 = vmul.f32 %v289, 1.442695
        %v291 = vpow.pop %v290
        %v292 = vadd.f32 %v282, %v285
        %v293 = vadd.f32 %v292, %v288
        %v294 = vadd.f32 %v293, %v291
        %v295 = vrcp.pop %v294
        %v296 = vmul.f32 %v294, %v295
        %v297 = vsub.f32 2.0, %v296
        %v298 = vmul.f32 %v295, %v297
        %v299 = vstv %s243
        %v300 = vadd.s32 %v299, %v242
        %vm301 = vcmp.lt.s32.totalorder %v300, 256
        %v302 = vsel %vm301, %v298, 0.0
        %v303 = vld [vmem:[%s194] sm:$0x3]
        %v304 = vunpack.c.0.s8 %v303
        %v305 = vmul.f32 %v282, %v302
        %vm306 = vcmp.eq.s32.totalorder %v304, 0
        %v307 = vsel %vm306, 1, 0
        %v308 = vcvt.s32.f32 %v307
        %v309 = vmul.f32 %v305, %v308
        %v310 = vadd.f32 %v244, %v309
        %v311 = vadd.f32 %v252, %v305
        %v312 = vadd.f32 %v260, %v308
        %v313 = vmul.f32 %v285, %v302
        %vm314 = vcmp.eq.s32.totalorder %v304, 1
        %v315 = vsel %vm314, 1, 0
        %v316 = vcvt.s32.f32 %v315
        %v317 = vmul.f32 %v313, %v316
        %v318 = vadd.f32 %v246, %v317
        %v319 = vadd.f32 %v254, %v313
        %v320 = vadd.f32 %v262, %v316
        %v321 = vmul.f32 %v288, %v302
        %vm322 = vcmp.eq.s32.totalorder %v304, 2
        %v323 = vsel %vm322, 1, 0
        %v324 = vcvt.s32.f32 %v323
        %v325 = vmul.f32 %v321, %v324
        %v326 = vadd.f32 %v248, %v325
        %v327 = vadd.f32 %v256, %v321
        %v328 = vadd.f32 %v264, %v324
        %v329 = vmul.f32 %v291, %v302
        %vm330 = vcmp.eq.s32.totalorder %v304, 3
        %v331 = vsel %vm330, 1, 0
        %v332 = vcvt.s32.f32 %v331
        %v333 = vmul.f32 %v329, %v332
        %v334 = vadd.f32 %v250, %v333
        %v335 = vadd.f32 %v258, %v329
        %v336 = vadd.f32 %v266, %v332
        %337 = vst [vmem:[%s220] sm:$0xff] %v310
        %338 = vst [vmem:[%s251] sm:$0xff] %v311
        %339 = vst [vmem:[%s259] sm:$0xff] %v312
        %340 = vst [vmem:[%s245] sm:$0xff] %v318
        %341 = vst [vmem:[%s253] sm:$0xff] %v319
        %342 = vst [vmem:[%s261] sm:$0xff] %v320
        %343 = vst [vmem:[%s247] sm:$0xff] %v326
        %344 = vst [vmem:[%s255] sm:$0xff] %v327
        %345 = vst [vmem:[%s263] sm:$0xff] %v328
        %346 = vst [vmem:[%s249] sm:$0xff] %v334
        %347 = vst [vmem:[%s257] sm:$0xff] %v335
        %348 = vst [vmem:[%s265] sm:$0xff] %v336
        %s349 = sand.u32 %s98, 1
        %s350 = scalar_lea.sflag [#allocation4], %s349
        %s351 = sand.u32 %s98, 1
        %s352 = smul.addr %s351, 96
        %s353 = scalar_lea.vmem [#allocation7], %s352
        // Predicated region
        $region41: #{tpu_custom_call.1} parent=27 // pred_check
          %p354 = pneg %p108
        $region42: #{tpu_custom_call.1} parent=27 // pred_check_branch
          %356 = sbr.rel (%p354) target = $region44
        $region43: #{tpu_custom_call.1} parent=27 // pred_region
          %358 = vsyncadd %s350, 0
          %s359 = smul.addr %s26, 12
          %s360 = smul.addr %s359, 8
          %s361 = scalar_lea.hbm %s2, %s360
          %s362 = sshll.u32 %s353, 4
          %s363 = int_to_ptr.vmem [resolvable:$true] %s362
          %s364 = sshll.u32 %s361, 4
          %s365 = int_to_ptr.hbm [resolvable:$true] %s364
          %370 = dma.vmem_to_hbm [thread:$0]  %s363, 1536, %s365, %s350, 128, 128, 8
        $region44: #{tpu_custom_call.1} parent=27 // pred_fallthru
          _
      $region28: #{tpu_custom_call.1} parent=5 // pred_fallthru
        _
      %p371 = scmp.le.s32.totalorder 2, %s17
      // Predicated region
      $region45: #{tpu_custom_call.1} parent=5 // pred_check
        %p372 = pneg %p371
      $region46: #{tpu_custom_call.1} parent=5 // pred_check_branch
        %374 = sbr.rel (%p372) target = $region48
      $region47: #{tpu_custom_call.1} parent=5 // pred_region
        %s375 = ssub.s32 %s17, 2
        // Predicated region
        $region49: #{tpu_custom_call.1} parent=47 // pred_check
          %p376 = pneg %p114
        $region50: #{tpu_custom_call.1} parent=47 // pred_check_branch
          %378 = sbr.rel (%p376) target = $region52
        $region51: #{tpu_custom_call.1} parent=47 // pred_region
          %s379 = sand.u32 %s99, 1
          %s380 = scalar_lea.sflag [#allocation4], %s379
          %s381 = sand.u32 %s99, 1
          %s382 = smul.addr %s381, 96
          %s383 = scalar_lea.vmem [#allocation7], %s382
          %385 = dma.done %s380, 1536
        $region52: #{tpu_custom_call.1} parent=47 // pred_fallthru
          _
      $region48: #{tpu_custom_call.1} parent=5 // pred_fallthru
        _
    $region6: #{tpu_custom_call.1} parent=1 // loop_footer
      %s21 = sadd.s32 1, %s17
    $region7: #{tpu_custom_call.1} parent=1 // loop_footer_branch
      %16 = sbr.rel target = $region3
    $region8: #{tpu_custom_call.1} parent=1 // loop_exit
      _
    %386 = vsyncpa [#allocation3], 1
    %s387 = scalar_lea.sflag [#allocation3], 1
    %388 = vsyncpa %s387, 1
    %389 = vsyncpa [#allocation6], 1
    %s390 = scalar_lea.sflag [#allocation6], 1
    %391 = vsyncpa %s390, 1
    %392 = vsyncpa [#allocation4], 1
    %s393 = scalar_lea.sflag [#allocation4], 1
    %394 = vsyncpa %s393, 1

</llo_original>
